<compile_context>
chip_gen: v7x
topology: tpu7x:2x2x1
jax: 0.10.0
libtpu: 0.0.40
codegen_flags: <defaults>
</compile_context>

<pallas_src>
import functools

import jax
import jax.numpy as jnp
from jax import lax
from jax.experimental import pallas as pl
from jax.experimental.pallas import tpu as pltpu


# ---------------------------------------------------------------------------
# Prologue: fold the Linear projection into the attention-score weights.
#   (sent @ W + b) @ parg.T == sent @ (W @ parg.T) + (b @ parg.T)
# One-time D*D*M / D*M cost, computed in f32 on the MXU.
# ---------------------------------------------------------------------------
def _fuse_proj_kernel(w_ref, parg_ref, b_ref, wp_ref, bp_ref):
    parg = parg_ref[...]
    # Transposed-RHS contraction ((1,),(1,)) -> (D, M): W @ parg.T
    wp_ref[...] = lax.dot_general(
        w_ref[...], parg,
        dimension_numbers=(((1,), (1,)), ((), ())),
        preferred_element_type=jnp.float32,
    ).astype(wp_ref.dtype)
    # (1, D) x (M, D) -> (1, M): b @ parg.T
    bp_ref[...] = lax.dot_general(
        b_ref[...], parg,
        dimension_numbers=(((1,), (1,)), ((), ())),
        preferred_element_type=jnp.float32,
    ).astype(bp_ref.dtype)


def _fuse_projection(w, parg, b2d):
    D = w.shape[0]
    M = parg.shape[0]
    return pl.pallas_call(
        _fuse_proj_kernel,
        out_shape=(
            jax.ShapeDtypeStruct((D, M), jnp.float32),
            jax.ShapeDtypeStruct((1, M), jnp.float32),
        ),
        in_specs=[pl.BlockSpec(memory_space=pltpu.MemorySpace.VMEM)] * 3,
        out_specs=(
            pl.BlockSpec(memory_space=pltpu.MemorySpace.VMEM),
            pl.BlockSpec(memory_space=pltpu.MemorySpace.VMEM),
        ),
    )(w, parg, b2d)


# ---------------------------------------------------------------------------
# Hot loop: one row-tile of sentences per grid step.
# ---------------------------------------------------------------------------
def _matmul_t_kernel(sent_ref, wp_ref, bp_ref, parg_ref, out_ref, *, compute_dtype):
    cd = compute_dtype
    # Attention logits: (tm, D) @ (D, M) + (1, M).  Operands in bf16 for the
    # MXU, accumulation in f32.  wp/parg refs are already stored in `cd`.
    scores = jnp.dot(
        sent_ref[...].astype(cd), wp_ref[...], preferred_element_type=jnp.float32
    ) + bp_ref[...]

    # Numerically-stable softmax; all elementwise math stays in f32.
    scores = scores - jnp.max(scores, axis=-1, keepdims=True)
    p = jnp.exp(scores)
    denom = jnp.sum(p, axis=-1, keepdims=True)

    # Unnormalized weighted paragraph sum: (tm, M) @ (M, D) -> (tm, D), f32 acc.
    out_unnorm = jnp.dot(
        p.astype(cd), parg_ref[...], preferred_element_type=jnp.float32
    )

    # Deferred, exact normalization: one reciprocal per row, broadcast multiply
    # over the lane-dense (tm, D) output.
    out_ref[...] = (out_unnorm * pl.reciprocal(denom)).astype(out_ref.dtype)


# ---------------------------------------------------------------------------
# Wrapper: VMEM-budget-aware row tiling.
# ---------------------------------------------------------------------------
def _vmem_capacity_bytes():
    try:
        info = pltpu.get_tpu_info()
        cap = getattr(info, "vmem_capacity_bytes", None)
        if cap:
            return int(cap)
    except Exception:
        pass
    return 64 << 20  # conservative default: v7x per-TensorCore physical VMEM


def _choose_block_rows(N, M, D, cd_bytes, budget):
    # Residency model (bytes):
    #   grid-invariant operands (W', parg in compute dtype, b' f32), x2 buffers
    #   in the worst case:
    inv = 2 * (2 * M * D * cd_bytes + 4 * M)
    #   per sentence row: sent f32 (x2 buffers) + out f32 (x2 buffers)
    #                     + ~3 f32 (tm, M) temporaries (scores / probs)
    #                     + bf16 copies of the sent / prob rows.
    per_row = 2 * 4 * D + 2 * 4 * D + 3 * 4 * M + cd_bytes * (D + M)
    tm = int(max(budget - inv, per_row * 128) // per_row)
    tm = min(tm, 1024)                       # >1024 rows: diminishing returns
    tm = min(tm, max(pl.cdiv(N, 2), 128))    # >=2 blocks when N>=256 (v7x: 2 TCs)
    tm = max(128 * (tm // 128), 128)         # 128-row granularity (v5e MXU, /8 tiles)
    return min(tm, N)


def matmul_t(sent_enc, parg_enc, w, b, *, block_rows=None,
             compute_dtype=jnp.bfloat16):
    """Pallas forward of MatmulT (eval mode).

    sent_enc: (N, D) f32, parg_enc: (M, D) f32,
    w: (D, D) stored as (in, out) so y = x @ w + b, b: (D,).  Returns (N, D).
    """
    N, D = sent_enc.shape
    M, _ = parg_enc.shape
    cd = jnp.dtype(compute_dtype)

    # One-time algebraic fusion of the Linear projection into the score weights.
    b2d = b.reshape(1, D).astype(jnp.float32)
    wp, bp = _fuse_projection(
        w.astype(jnp.float32), parg_enc.astype(jnp.float32), b2d
    )

    # Grid-invariant operands pre-cast once to the MXU compute dtype
    # (halves their VMEM residency and HBM traffic vs. casting per grid step).
    wp_c = wp.astype(cd)
    parg_c = parg_enc.astype(cd)

    budget = min(_vmem_capacity_bytes() // 2, 64 << 20)
    if block_rows is not None:
        tm = min(int(block_rows), N)
    else:
        tm = _choose_block_rows(N, M, D, cd.itemsize, budget)
    grid = (pl.cdiv(N, tm),)

    cost = pl.CostEstimate(
        flops=2 * N * D * M + 2 * N * M * D,
        transcendentals=N * M,
        bytes_accessed=(
            N * D * 4                      # sent in
            + N * D * 4                    # out
            + D * M * cd.itemsize          # W'
            + M * D * cd.itemsize          # parg
            + M * 4                        # b'
        ),
    )

    kernel = functools.partial(_matmul_t_kernel, compute_dtype=cd)

    def _invariant_spec(shape, single_buffer):
        if single_buffer:
            return pl.BlockSpec(shape, lambda i: (0, 0),
                                pipeline_mode=pl.Buffered(1))
        return pl.BlockSpec(shape, lambda i: (0, 0))

    def _call(single_buffer_invariants):
        return pl.pallas_call(
            kernel,
            out_shape=jax.ShapeDtypeStruct((N, D), sent_enc.dtype),
            grid=grid,
            in_specs=[
                pl.BlockSpec((tm, D), lambda i: (i, 0)),               # sent (streamed)
                _invariant_spec((D, M), single_buffer_invariants),     # W'
                _invariant_spec((1, M), single_buffer_invariants),     # b'
                _invariant_spec((M, D), single_buffer_invariants),     # parg
            ],
            out_specs=pl.BlockSpec((tm, D), lambda i: (i, 0)),
            compiler_params=pltpu.CompilerParams(
                dimension_semantics=("parallel",),   # shard rows across v7x's 2 TCs
                vmem_limit_bytes=int(budget),
            ),
            cost_estimate=cost,
        )(sent_enc, wp_c, bp, parg_c)

    try:
        return _call(True)
    except Exception:
        # pipeline_mode=pl.Buffered(1) (single-buffering the grid-invariant
        # operands) may be rejected by some jax/libtpu combinations; fall back
        # to default double-buffering (identical results, more VMEM).
        return _call(False)


# ---------------------------------------------------------------------------
# Pure-JAX reference (eval-mode MatmulT forward).
# ---------------------------------------------------------------------------
def reference(sent_enc, parg_enc, w, b):
    sent_proj = sent_enc @ w + b
    attn = jax.nn.softmax(sent_proj @ parg_enc.T, axis=-1)
    return attn @ parg_enc


if __name__ == "__main__":
    # Small shapes consistent with the module: word_dim=128 (lane-dense stores),
    # 8 sentences, 8 paragraphs.
    D = 128
    N, M = 8, 8
    key = jax.random.PRNGKey(0)
    k1, k2, k3, k4, k5 = jax.random.split(key, 5)

    sent_enc = jax.random.normal(k1, (N, D), dtype=jnp.float32)
    parg_enc = jax.random.normal(k2, (M, D), dtype=jnp.float32)
    # Deterministic Linear(word_dim, word_dim) params; w stored as (in, out)
    # so y = x @ w + b.
    w = jax.random.normal(k3, (D, D), dtype=jnp.float32) * (1.0 / D)
    b = jax.random.normal(k4, (D,), dtype=jnp.float32) * 0.01

    ref = reference(sent_enc, parg_enc, w, b)

    # 1) f32 compute path: verifies the fused-projection / deferred-softmax
    #    algorithm and the pipeline machinery against the reference.
    out_f32 = jax.block_until_ready(
        matmul_t(sent_enc, parg_enc, w, b, compute_dtype=jnp.float32)
    )
    assert out_f32.shape == (N, D)
    assert jnp.allclose(out_f32, ref, atol=1e-2, rtol=1e-2)

    # 2) Default bf16-MXU path (production configuration).
    out_bf16 = jax.block_until_ready(matmul_t(sent_enc, parg_enc, w, b))
    assert out_bf16.shape == (N, D)
    assert jnp.allclose(out_bf16, ref, atol=5e-2, rtol=5e-2)

    # 3) Larger N exercises the row-tiled grid path (>=2 blocks on the
    #    "parallel" axis -> both TensorCores on v7x).
    N2 = 256
    sent2 = jax.random.normal(k5, (N2, D), dtype=jnp.float32)
    ref2 = reference(sent2, parg_enc, w, b)
    out2 = jax.block_until_ready(matmul_t(sent2, parg_enc, w, b))
    assert out2.shape == (N2, D)
    assert jnp.allclose(out2, ref2, atol=5e-2, rtol=5e-2)

    print("KERNEL_OK")
</pallas_src>

<mosaic_0001>
module attributes {stable_mosaic.version = 11 : i64} {
  func.func @_fuse_proj_kernel(%arg0: memref<128x128xf32, #tpu.memory_space<vmem>>, %arg1: memref<8x128xf32, #tpu.memory_space<vmem>>, %arg2: memref<1x128xf32, #tpu.memory_space<vmem>>, %arg3: memref<128x8xf32, #tpu.memory_space<vmem>>, %arg4: memref<1x8xf32, #tpu.memory_space<vmem>>) attributes {dimension_semantics = [], scalar_prefetch = 0 : i64, scratch_operands = 0 : i64, tpu.core_type = #tpu.core_type<tc>} {
    %c0 = arith.constant 0 : index
    %c0_0 = arith.constant 0 : index
    %0 = vector.load %arg1[%c0, %c0_0] : memref<8x128xf32, #tpu.memory_space<vmem>>, vector<8x128xf32>
    %c0_1 = arith.constant 0 : index
    %c0_2 = arith.constant 0 : index
    %1 = vector.load %arg0[%c0_1, %c0_2] : memref<128x128xf32, #tpu.memory_space<vmem>>, vector<128x128xf32>
    %cst = arith.constant dense<0.000000e+00> : vector<128x8xf32>
    %2 = tpu.matmul %1, %0, %cst {dimension_numbers = #tpu.dot_dimension_numbers<[1], [1], [0], [0], [0, 0, 1, 0], [], []>} : vector<128x128xf32>, vector<8x128xf32>, vector<128x8xf32> -> vector<128x8xf32>
    %c0_3 = arith.constant 0 : index
    %c0_4 = arith.constant 0 : index
    %3 = vector.load %arg3[%c0_3, %c0_4] : memref<128x8xf32, #tpu.memory_space<vmem>>, vector<128x8xf32>
    tpu.vector_store %arg3[%c0_3, %c0_4], %2 {strides = array<i32>} : memref<128x8xf32, #tpu.memory_space<vmem>>, vector<128x8xf32>,
    %c0_5 = arith.constant 0 : index
    %c0_6 = arith.constant 0 : index
    %4 = vector.load %arg2[%c0_5, %c0_6] : memref<1x128xf32, #tpu.memory_space<vmem>>, vector<1x128xf32>
    %cst_7 = arith.constant dense<0.000000e+00> : vector<1x8xf32>
    %5 = tpu.matmul %4, %0, %cst_7 {dimension_numbers = #tpu.dot_dimension_numbers<[1], [1], [0], [0], [0, 0, 1, 0], [], []>} : vector<1x128xf32>, vector<8x128xf32>, vector<1x8xf32> -> vector<1x8xf32>
    %c0_8 = arith.constant 0 : index
    %c0_9 = arith.constant 0 : index
    %6 = vector.load %arg4[%c0_8, %c0_9] : memref<1x8xf32, #tpu.memory_space<vmem>>, vector<1x8xf32>
    tpu.vector_store %arg4[%c0_8, %c0_9], %5 {strides = array<i32>} : memref<1x8xf32, #tpu.memory_space<vmem>>, vector<1x8xf32>,
    return
  }
}

</mosaic_0001>

<llo_original>
// kernel: tpu_custom_call.1
$region0: #{tpu_custom_call.1}
  #allocation0 [shape = 'u32[]', space=smem, size = 0x4, offset = 0x4, fixed_abs, tag = 'smem constant byte address 0x4 - core index']
  #allocation1 [shape = 'u32[144,128]{1,0:T(1,128)}', space=vmem, size = 0x12000, scoped, tag = 'internal scratch']
  %s0 = inlined_call_operand.hbm [shape: f32[128,128], index: 0, kind: input, shape index: {}]
  %s1 = inlined_call_operand.hbm [shape: f32[8,128], index: 1, kind: input, shape index: {}]
  %s2 = inlined_call_operand.vmem [shape: f32[1,128], index: 2, kind: input, shape index: {}]
  %s3 = inlined_call_operand.vmem [shape: f32[128,8], index: 3, kind: output, shape index: {0}]
  %s4 = inlined_call_operand.hbm [shape: f32[1,8], index: 4, kind: output, shape index: {1}]
  %5 = xla_tuple %s3, %s4
  %s6 = sld [smem:[#allocation0]]
  $region38: #{tpu_custom_call.1} parent=0
    _
  %s8 = ssub.s32 1, %s6
  %s9 = scalar_select 0, %s8, %s6
  $region1: #{tpu_custom_call.1} parent=0
    #allocation2 [shape = 'u8[65536]{0}', space=vmem, size = 0x10000, scoped, tag = 'input window, operand 0, single buffered']
    #allocation3 [shape = 's32[1]{0}', space=sflag, size = 0x4, scoped, tag = 'scoped memory for tpu_custom_call.1']
    #allocation4 [shape = 's32[1]{0}', space=sflag, size = 0x4, scoped, tag = 'scoped memory for tpu_custom_call.1']
    #allocation5 [shape = 'u8[4096]{0}', space=vmem, size = 0x1000, scoped, tag = 'input window, operand 1, single buffered']
    #allocation6 [shape = 's32[1]{0}', space=sflag, size = 0x4, scoped, tag = 'scoped memory for tpu_custom_call.1']
    #allocation7 [shape = 'u8[512]{0}', space=vmem, size = 0x400, scoped, tag = 'output window, operand 1, single buffered']
    %10 = vsyncpa [#allocation3], 0
    %11 = vsyncpa [#allocation6], 0
    %12 = vsyncpa [#allocation4], 0
    // Predicated region
    $region2: #{tpu_custom_call.1} parent=1 // pred_check
      _
    $region3: #{tpu_custom_call.1} parent=1 // pred_check_branch
      %14 = sbr.rel (0) target = $region5
    $region4: #{tpu_custom_call.1} parent=1 // pred_region
      %s16 = ssub.s32 2048, 2048
      %17 = vsyncadd [#allocation3], %s16
      %s18 = sshll.u32 [#allocation2], 4
      %s19 = int_to_ptr.vmem [resolvable:$true] %s18
      %24 = dma.hbm_to_vmem [thread:$0]  %s0, 2048, %s19, [#allocation3], 128, 128, 8
    $region5: #{tpu_custom_call.1} parent=1 // pred_fallthru
      _
    // Predicated region
    $region6: #{tpu_custom_call.1} parent=1 // pred_check
      _
    $region7: #{tpu_custom_call.1} parent=1 // pred_check_branch
      %26 = sbr.rel (0) target = $region9
    $region8: #{tpu_custom_call.1} parent=1 // pred_region
      %s28 = ssub.s32 128, 128
      %29 = vsyncadd [#allocation6], %s28
      %s31 = sshll.u32 [#allocation5], 4
      %s32 = int_to_ptr.vmem [resolvable:$true] %s31
      %34 = dma.hbm_to_vmem [thread:$0]  %s1, 128, %s32, [#allocation6]
    $region9: #{tpu_custom_call.1} parent=1 // pred_fallthru
      _
    // Predicated region
    $region10: #{tpu_custom_call.1} parent=1 // pred_check
      _
    $region11: #{tpu_custom_call.1} parent=1 // pred_check_branch
      %36 = sbr.rel (0) target = $region13
    $region12: #{tpu_custom_call.1} parent=1 // pred_region
      _
    $region13: #{tpu_custom_call.1} parent=1 // pred_fallthru
      _
    // Predicated region
    $region14: #{tpu_custom_call.1} parent=1 // pred_check
      _
    $region15: #{tpu_custom_call.1} parent=1 // pred_check_branch
      %38 = sbr.rel (0) target = $region17
    $region16: #{tpu_custom_call.1} parent=1 // pred_region
      %39 = dma.done [#allocation3], 2048
    $region17: #{tpu_custom_call.1} parent=1 // pred_fallthru
      _
    // Predicated region
    $region18: #{tpu_custom_call.1} parent=1 // pred_check
      _
    $region19: #{tpu_custom_call.1} parent=1 // pred_check_branch
      %41 = sbr.rel (0) target = $region21
    $region20: #{tpu_custom_call.1} parent=1 // pred_region
      %42 = dma.done [#allocation6], 128
    $region21: #{tpu_custom_call.1} parent=1 // pred_fallthru
      _
    %v43 = vld [vmem:[#allocation5] sm:$0xff]
    %v44 = vld [vmem:[#allocation2] sm:$0xff]
    %v45 = vld [vmem:[#allocation2 + $0x8] sm:$0xff]
    %v46 = vld [vmem:[#allocation2 + $0x10] sm:$0xff]
    %v47 = vld [vmem:[#allocation2 + $0x18] sm:$0xff]
    %v48 = vld [vmem:[#allocation2 + $0x20] sm:$0xff]
    %v49 = vld [vmem:[#allocation2 + $0x28] sm:$0xff]
    %v50 = vld [vmem:[#allocation2 + $0x30] sm:$0xff]
    %v51 = vld [vmem:[#allocation2 + $0x38] sm:$0xff]
    %v52 = vld [vmem:[#allocation2 + $0x40] sm:$0xff]
    %v53 = vld [vmem:[#allocation2 + $0x48] sm:$0xff]
    %v54 = vld [vmem:[#allocation2 + $0x50] sm:$0xff]
    %v55 = vld [vmem:[#allocation2 + $0x58] sm:$0xff]
    %v56 = vld [vmem:[#allocation2 + $0x60] sm:$0xff]
    %v57 = vld [vmem:[#allocation2 + $0x68] sm:$0xff]
    %v58 = vld [vmem:[#allocation2 + $0x70] sm:$0xff]
    %v59 = vld [vmem:[#allocation2 + $0x78] sm:$0xff]
    %60 = vmatprep.subr.mxu0 0.0
    %61 = vmatpush1.xpose.msra.mxu0 %v43
    %62 = vmatprep.subr.mxu0 0.0
    %63 = vmatpush1.xpose.msra.mxu0 0.0
    %64 = vmatprep.subr.mxu0 0.0
    %65 = vmatpush1.xpose.msra.mxu0 0.0
    %66 = vmatprep.subr.mxu0 0.0
    %67 = vmatpush1.xpose.msra.mxu0 0.0
    %68 = vmatprep.subr.mxu0 0.0
    %69 = vmatpush1.xpose.msra.mxu0 0.0
    %70 = vmatprep.subr.mxu0 0.0
    %71 = vmatpush1.xpose.msra.mxu0 0.0
    %72 = vmatprep.subr.mxu0 0.0
    %73 = vmatpush1.xpose.msra.mxu0 0.0
    %74 = vmatprep.subr.mxu0 0.0
    %75 = vmatpush1.xpose.msra.mxu0 0.0
    %76 = vmatprep.subr.mxu0 0.0
    %77 = vmatpush1.xpose.msra.mxu0 0.0
    %78 = vmatprep.subr.mxu0 0.0
    %79 = vmatpush1.xpose.msra.mxu0 0.0
    %80 = vmatprep.subr.mxu0 0.0
    %81 = vmatpush1.xpose.msra.mxu0 0.0
    %82 = vmatprep.subr.mxu0 0.0
    %83 = vmatpush1.xpose.msra.mxu0 0.0
    %84 = vmatprep.subr.mxu0 0.0
    %85 = vmatpush1.xpose.msra.mxu0 0.0
    %86 = vmatprep.subr.mxu0 0.0
    %87 = vmatpush1.xpose.msra.mxu0 0.0
    %88 = vmatprep.subr.mxu0 0.0
    %89 = vmatpush1.xpose.msra.mxu0 0.0
    %90 = vmatprep.subr.mxu0 0.0
    %91 = vmatpush1.xpose.msra.mxu0 0.0
    %92 = vmatprep.subr.mxu0 0.0
    %93 = vmatpush1.xpose.msra.mxu0 0.0
    %94 = vmatprep.subr.mxu0 0.0
    %95 = vmatpush1.xpose.msra.mxu0 0.0
    %96 = vmatprep.subr.mxu0 0.0
    %97 = vmatpush1.xpose.msra.mxu0 0.0
    %98 = vmatprep.subr.mxu0 0.0
    %99 = vmatpush1.xpose.msra.mxu0 0.0
    %100 = vmatprep.subr.mxu0 0.0
    %101 = vmatpush1.xpose.msra.mxu0 0.0
    %102 = vmatprep.subr.mxu0 0.0
    %103 = vmatpush1.xpose.msra.mxu0 0.0
    %104 = vmatprep.subr.mxu0 0.0
    %105 = vmatpush1.xpose.msra.mxu0 0.0
    %106 = vmatprep.subr.mxu0 0.0
    %107 = vmatpush1.xpose.msra.mxu0 0.0
    %108 = vmatprep.subr.mxu0 0.0
    %109 = vmatpush1.xpose.msra.mxu0 0.0
    %110 = vmatprep.subr.mxu0 0.0
    %111 = vmatpush1.xpose.msra.mxu0 0.0
    %112 = vmatprep.subr.mxu0 0.0
    %113 = vmatpush1.xpose.msra.mxu0 0.0
    %114 = vmatprep.subr.mxu0 0.0
    %115 = vmatpush1.xpose.msra.mxu0 0.0
    %116 = vmatprep.subr.mxu0 0.0
    %117 = vmatpush1.xpose.msra.mxu0 0.0
    %118 = vmatprep.subr.mxu0 0.0
    %119 = vmatpush1.xpose.msra.mxu0 0.0
    %120 = vmatprep.subr.mxu0 0.0
    %121 = vmatpush1.xpose.msra.mxu0 0.0
    %122 = vmatprep.subr.mxu0 0.0
    %123 = vmatpush1.xpose.msra.mxu0 0.0
    %124 = vmatprep.mubr.f32.mxu0 0.0
    %125 = vmatmul.mubr.f32.gmra.mrb[0].mxu0 %v44
    %v126 = vpop.f32.mrb[0].mxu0
    %v127 = vadd.f32 0.0, %v126
    %v128 = vpop.f32.mrb[0].mxu0
    %129 = vmatprep.mubr.f32.mxu0 0.0
    %130 = vmatmul.mubr.f32.gmra.mrb[0].mxu0 %v45
    %v131 = vpop.f32.mrb[0].mxu0
    %v132 = vadd.f32 0.0, %v131
    %v133 = vpop.f32.mrb[0].mxu0
    %134 = vmatprep.mubr.f32.mxu0 0.0
    %135 = vmatmul.mubr.f32.gmra.mrb[0].mxu0 %v46
    %v136 = vpop.f32.mrb[0].mxu0
    %v137 = vadd.f32 0.0, %v136
    %v138 = vpop.f32.mrb[0].mxu0
    %139 = vmatprep.mubr.f32.mxu0 0.0
    %140 = vmatmul.mubr.f32.gmra.mrb[0].mxu0 %v47
    %v141 = vpop.f32.mrb[0].mxu0
    %v142 = vadd.f32 0.0, %v141
    %v143 = vpop.f32.mrb[0].mxu0
    %144 = vmatprep.mubr.f32.mxu0 0.0
    %145 = vmatmul.mubr.f32.gmra.mrb[0].mxu0 %v48
    %v146 = vpop.f32.mrb[0].mxu0
    %v147 = vadd.f32 0.0, %v146
    %v148 = vpop.f32.mrb[0].mxu0
    %149 = vmatprep.mubr.f32.mxu0 0.0
    %150 = vmatmul.mubr.f32.gmra.mrb[0].mxu0 %v49
    %v151 = vpop.f32.mrb[0].mxu0
    %v152 = vadd.f32 0.0, %v151
    %v153 = vpop.f32.mrb[0].mxu0
    %154 = vmatprep.mubr.f32.mxu0 0.0
    %155 = vmatmul.mubr.f32.gmra.mrb[0].mxu0 %v50
    %v156 = vpop.f32.mrb[0].mxu0
    %v157 = vadd.f32 0.0, %v156
    %v158 = vpop.f32.mrb[0].mxu0
    %159 = vmatprep.mubr.f32.mxu0 0.0
    %160 = vmatmul.mubr.f32.gmra.mrb[0].mxu0 %v51
    %v161 = vpop.f32.mrb[0].mxu0
    %v162 = vadd.f32 0.0, %v161
    %v163 = vpop.f32.mrb[0].mxu0
    %164 = vmatprep.mubr.f32.mxu0 0.0
    %165 = vmatmul.mubr.f32.gmra.mrb[0].mxu0 %v52
    %v166 = vpop.f32.mrb[0].mxu0
    %v167 = vadd.f32 0.0, %v166
    %v168 = vpop.f32.mrb[0].mxu0
    %169 = vmatprep.mubr.f32.mxu0 0.0
    %170 = vmatmul.mubr.f32.gmra.mrb[0].mxu0 %v53
    %v171 = vpop.f32.mrb[0].mxu0
    %v172 = vadd.f32 0.0, %v171
    %v173 = vpop.f32.mrb[0].mxu0
    %174 = vmatprep.mubr.f32.mxu0 0.0
    %175 = vmatmul.mubr.f32.gmra.mrb[0].mxu0 %v54
    %v176 = vpop.f32.mrb[0].mxu0
    %v177 = vadd.f32 0.0, %v176
    %v178 = vpop.f32.mrb[0].mxu0
    %179 = vmatprep.mubr.f32.mxu0 0.0
    %180 = vmatmul.mubr.f32.gmra.mrb[0].mxu0 %v55
    %v181 = vpop.f32.mrb[0].mxu0
    %v182 = vadd.f32 0.0, %v181
    %v183 = vpop.f32.mrb[0].mxu0
    %184 = vmatprep.mubr.f32.mxu0 0.0
    %185 = vmatmul.mubr.f32.gmra.mrb[0].mxu0 %v56
    %v186 = vpop.f32.mrb[0].mxu0
    %v187 = vadd.f32 0.0, %v186
    %v188 = vpop.f32.mrb[0].mxu0
    %189 = vmatprep.mubr.f32.mxu0 0.0
    %190 = vmatmul.mubr.f32.gmra.mrb[0].mxu0 %v57
    %v191 = vpop.f32.mrb[0].mxu0
    %v192 = vadd.f32 0.0, %v191
    %v193 = vpop.f32.mrb[0].mxu0
    %194 = vmatprep.mubr.f32.mxu0 0.0
    %195 = vmatmul.mubr.f32.gmra.mrb[0].mxu0 %v58
    %v196 = vpop.f32.mrb[0].mxu0
    %v197 = vadd.f32 0.0, %v196
    %v198 = vpop.f32.mrb[0].mxu0
    %199 = vmatprep.mubr.f32.mxu0 0.0
    %200 = vmatmul.mubr.f32.gmra.mrb[0].mxu0 %v59
    %v201 = vpop.f32.mrb[0].mxu0
    %v202 = vadd.f32 0.0, %v201
    %v203 = vpop.f32.mrb[0].mxu0
    %204 = vdwg.mxu0
    %vm205 = vcmask 64512
    %206 = vst.msk [vmem:[%s3] sm:$0xff] %vm205, %v127
    %207 = vst.msk [vmem:[%s3 + $0x8] sm:$0xff] %vm205, %v132
    %208 = vst.msk [vmem:[%s3 + $0x10] sm:$0xff] %vm205, %v137
    %209 = vst.msk [vmem:[%s3 + $0x18] sm:$0xff] %vm205, %v142
    %210 = vst.msk [vmem:[%s3 + $0x20] sm:$0xff] %vm205, %v147
    %211 = vst.msk [vmem:[%s3 + $0x28] sm:$0xff] %vm205, %v152
    %212 = vst.msk [vmem:[%s3 + $0x30] sm:$0xff] %vm205, %v157
    %213 = vst.msk [vmem:[%s3 + $0x38] sm:$0xff] %vm205, %v162
    %214 = vst.msk [vmem:[%s3 + $0x40] sm:$0xff] %vm205, %v167
    %215 = vst.msk [vmem:[%s3 + $0x48] sm:$0xff] %vm205, %v172
    %216 = vst.msk [vmem:[%s3 + $0x50] sm:$0xff] %vm205, %v177
    %217 = vst.msk [vmem:[%s3 + $0x58] sm:$0xff] %vm205, %v182
    %218 = vst.msk [vmem:[%s3 + $0x60] sm:$0xff] %vm205, %v187
    %219 = vst.msk [vmem:[%s3 + $0x68] sm:$0xff] %vm205, %v192
    %220 = vst.msk [vmem:[%s3 + $0x70] sm:$0xff] %vm205, %v197
    %221 = vst.msk [vmem:[%s3 + $0x78] sm:$0xff] %vm205, %v202
    %v222 = vld [vmem:[%s2] sm:$0x1]
    %223 = vmatprep.subr.mxu0 0.0
    %224 = vmatpush1.xpose.msra.mxu0 %v43
    %225 = vmatprep.subr.mxu0 0.0
    %226 = vmatpush1.xpose.msra.mxu0 0.0
    %227 = vmatprep.subr.mxu0 0.0
    %228 = vmatpush1.xpose.msra.mxu0 0.0
    %229 = vmatprep.subr.mxu0 0.0
    %230 = vmatpush1.xpose.msra.mxu0 0.0
    %231 = vmatprep.subr.mxu0 0.0
    %232 = vmatpush1.xpose.msra.mxu0 0.0
    %233 = vmatprep.subr.mxu0 0.0
    %234 = vmatpush1.xpose.msra.mxu0 0.0
    %235 = vmatprep.subr.mxu0 0.0
    %236 = vmatpush1.xpose.msra.mxu0 0.0
    %237 = vmatprep.subr.mxu0 0.0
    %238 = vmatpush1.xpose.msra.mxu0 0.0
    %239 = vmatprep.subr.mxu0 0.0
    %240 = vmatpush1.xpose.msra.mxu0 0.0
    %241 = vmatprep.subr.mxu0 0.0
    %242 = vmatpush1.xpose.msra.mxu0 0.0
    %243 = vmatprep.subr.mxu0 0.0
    %244 = vmatpush1.xpose.msra.mxu0 0.0
    %245 = vmatprep.subr.mxu0 0.0
    %246 = vmatpush1.xpose.msra.mxu0 0.0
    %247 = vmatprep.subr.mxu0 0.0
    %248 = vmatpush1.xpose.msra.mxu0 0.0
    %249 = vmatprep.subr.mxu0 0.0
    %250 = vmatpush1.xpose.msra.mxu0 0.0
    %251 = vmatprep.subr.mxu0 0.0
    %252 = vmatpush1.xpose.msra.mxu0 0.0
    %253 = vmatprep.subr.mxu0 0.0
    %254 = vmatpush1.xpose.msra.mxu0 0.0
    %255 = vmatprep.subr.mxu0 0.0
    %256 = vmatpush1.xpose.msra.mxu0 0.0
    %257 = vmatprep.subr.mxu0 0.0
    %258 = vmatpush1.xpose.msra.mxu0 0.0
    %259 = vmatprep.subr.mxu0 0.0
    %260 = vmatpush1.xpose.msra.mxu0 0.0
    %261 = vmatprep.subr.mxu0 0.0
    %262 = vmatpush1.xpose.msra.mxu0 0.0
    %263 = vmatprep.subr.mxu0 0.0
    %264 = vmatpush1.xpose.msra.mxu0 0.0
    %265 = vmatprep.subr.mxu0 0.0
    %266 = vmatpush1.xpose.msra.mxu0 0.0
    %267 = vmatprep.subr.mxu0 0.0
    %268 = vmatpush1.xpose.msra.mxu0 0.0
    %269 = vmatprep.subr.mxu0 0.0
    %270 = vmatpush1.xpose.msra.mxu0 0.0
    %271 = vmatprep.subr.mxu0 0.0
    %272 = vmatpush1.xpose.msra.mxu0 0.0
    %273 = vmatprep.subr.mxu0 0.0
    %274 = vmatpush1.xpose.msra.mxu0 0.0
    %275 = vmatprep.subr.mxu0 0.0
    %276 = vmatpush1.xpose.msra.mxu0 0.0
    %277 = vmatprep.subr.mxu0 0.0
    %278 = vmatpush1.xpose.msra.mxu0 0.0
    %279 = vmatprep.subr.mxu0 0.0
    %280 = vmatpush1.xpose.msra.mxu0 0.0
    %281 = vmatprep.subr.mxu0 0.0
    %282 = vmatpush1.xpose.msra.mxu0 0.0
    %283 = vmatprep.subr.mxu0 0.0
    %284 = vmatpush1.xpose.msra.mxu0 0.0
    %285 = vmatprep.subr.mxu0 0.0
    %286 = vmatpush1.xpose.msra.mxu0 0.0
    %287 = vmatprep.mubr.f32.mxu0 0.0
    %288 = vmatmul.mubr.f32.gmra.mrb[0].mxu0 %v222
    %v289 = vpop.f32.mrb[0].mxu0
    %v290 = vadd.f32 0.0, %v289
    %v291 = vpop.f32.mrb[0].mxu0
    %292 = vdwg.mxu0
    %vm293 = vcmask 57344
    %294 = vst.msk [vmem:[#allocation7] sm:$0x1] %vm293, %v290
    // Predicated region
    $region22: #{tpu_custom_call.1} parent=1 // pred_check
      _
    $region23: #{tpu_custom_call.1} parent=1 // pred_check_branch
      %296 = sbr.rel (0) target = $region25
    $region24: #{tpu_custom_call.1} parent=1 // pred_region
      _
    $region25: #{tpu_custom_call.1} parent=1 // pred_fallthru
      _
    // Predicated region
    $region26: #{tpu_custom_call.1} parent=1 // pred_check
      _
    $region27: #{tpu_custom_call.1} parent=1 // pred_check_branch
      %298 = sbr.rel (0) target = $region29
    $region28: #{tpu_custom_call.1} parent=1 // pred_region
      %s300 = ssub.s32 16, 16
      %301 = vsyncadd [#allocation4], %s300
      %s303 = sshll.u32 [#allocation7], 4
      %s304 = int_to_ptr.vmem [resolvable:$true] %s303
      %306 = dma.vmem_to_hbm [thread:$0]  %s304, 16, %s4, [#allocation4]
    $region29: #{tpu_custom_call.1} parent=1 // pred_fallthru
      _
    // Predicated region
    $region30: #{tpu_custom_call.1} parent=1 // pred_check
      _
    $region31: #{tpu_custom_call.1} parent=1 // pred_check_branch
      %308 = sbr.rel (0) target = $region33
    $region32: #{tpu_custom_call.1} parent=1 // pred_region
      _
    $region33: #{tpu_custom_call.1} parent=1 // pred_fallthru
      _
    // Predicated region
    $region34: #{tpu_custom_call.1} parent=1 // pred_check
      _
    $region35: #{tpu_custom_call.1} parent=1 // pred_check_branch
      %310 = sbr.rel (0) target = $region37
    $region36: #{tpu_custom_call.1} parent=1 // pred_region
      %311 = dma.done [#allocation4], 16
    $region37: #{tpu_custom_call.1} parent=1 // pred_fallthru
      _
    %312 = vsyncpa [#allocation3], 1
    %313 = vsyncpa [#allocation6], 1
    %314 = vsyncpa [#allocation4], 1

</llo_original>
